<compile_context>
chip_gen: v7x
topology: tpu7x:2x2x1
jax: 0.10.0
libtpu: 0.0.40
codegen_flags: <defaults>
</compile_context>

<pallas_src>
import functools

import jax
import jax.numpy as jnp
from jax.experimental import pallas as pl
from jax.experimental.pallas import tpu as pltpu


def _round_up(x: int, m: int) -> int:
    return ((x + m - 1) // m) * m


# ---------------------------------------------------------------------------
# Pallas kernel: fused two-layer MLP  (x @ W1 + b1) -> ReLU -> (@ W2 + b2)
# One grid step processes a (TM, c_in) row-tile; weights stay resident in VMEM.
# ---------------------------------------------------------------------------
def _token_embed_kernel(x_ref, w1_ref, b1_ref, w2_ref, b2_ref, o_ref):
    x = x_ref[...]                                           # (TM, c_in) bf16
    h = jnp.dot(x, w1_ref[...], preferred_element_type=jnp.float32)
    h = jnp.maximum(h + b1_ref[...], 0.0)                    # bias + ReLU in f32
    y = jnp.dot(h.astype(jnp.bfloat16), w2_ref[...],
                preferred_element_type=jnp.float32)
    o_ref[...] = (y + b2_ref[...]).astype(o_ref.dtype)


def _vmem_limit_bytes() -> int:
    """Scoped-VMEM budget derived from the chip (v5e/v6e: 96 MiB, v7x: 48 MiB)."""
    phys = 64 * 1024 * 1024
    try:
        phys = int(getattr(pltpu.get_tpu_info(), "vmem_capacity_bytes", phys))
    except Exception:
        pass
    return min((phys * 3) // 4, 96 * 1024 * 1024)


def _select_tm(n, c_in, hp, dp, out_bytes, weight_bytes, vmem_limit) -> int:
    """Largest row tile whose double-buffered working set fits the VMEM budget."""
    budget = max(vmem_limit - weight_bytes - 4 * 1024 * 1024, 1 << 20)
    per_row = (2 * c_in * 2          # x tile, bf16, double-buffered
               + 2 * dp * out_bytes  # out tile, double-buffered
               + hp * 4 + hp * 2     # f32 hidden + bf16 copy for 2nd matmul
               + dp * 4)             # f32 product before store
    tm = 8
    for cand in (1024, 512, 256, 128, 64, 32, 16, 8):
        if cand * per_row <= budget:
            tm = cand
            break
    # Don't overshoot the actual row count (rows are NOT padded to tm).
    tm = min(tm, _round_up(n, 8))
    # Keep >= 2 row tiles when possible so both v7x TensorCores get work.
    while tm > 8 and pl.cdiv(n, tm) < 2:
        tm //= 2
    return max(8, (tm // 8) * 8)


def token_embedding_pallas(x2d, w1_p, b1_p, w2_p, b2_p, *, d_model,
                           out_dtype=jnp.float32):
    """x2d: (N, c_in) bf16 -> (N, d_model) via fused, row-tiled MLP kernel.

    w1_p/b1_p/w2_p/b2_p are the pre-padded (128-lane hidden/output dims),
    pre-cast parameters produced by prepare_params().
    """
    n, c_in = x2d.shape
    hp = w1_p.shape[1]
    dp = w2_p.shape[1]

    weight_bytes = (c_in * hp + hp * dp) * 2 + (hp + dp) * 4
    vmem_limit = _vmem_limit_bytes()
    out_bytes = jnp.dtype(out_dtype).itemsize
    tm = _select_tm(n, c_in, hp, dp, out_bytes, weight_bytes, vmem_limit)

    const = lambda i: (0, 0)
    resident = pl.Buffered(1)   # DMA'd once; no double buffer for weights/bias

    out = pl.pallas_call(
        _token_embed_kernel,
        out_shape=jax.ShapeDtypeStruct((n, dp), out_dtype),
        grid_spec=pltpu.PrefetchScalarGridSpec(
            num_scalar_prefetch=0,
            grid=(pl.cdiv(n, tm),),
            in_specs=[
                pl.BlockSpec((tm, c_in), lambda i: (i, 0)),            # x tile
                pl.BlockSpec((c_in, hp), const, pipeline_mode=resident),  # w1
                pl.BlockSpec((1, hp), const, pipeline_mode=resident),     # b1
                pl.BlockSpec((hp, dp), const, pipeline_mode=resident),    # w2
                pl.BlockSpec((1, dp), const, pipeline_mode=resident),     # b2
            ],
            out_specs=pl.BlockSpec((tm, dp), lambda i: (i, 0)),
        ),
        compiler_params=pltpu.CompilerParams(
            dimension_semantics=("parallel",),
            vmem_limit_bytes=vmem_limit,
        ),
    )(x2d, w1_p, b1_p, w2_p, b2_p)

    return out if dp == d_model else out[:, :d_model]


# ---------------------------------------------------------------------------
# One-time parameter preparation (pad hidden/output dims to 128, cast to bf16).
# Called once outside jit so no per-forward pad/cast traffic is generated.
# ---------------------------------------------------------------------------
def prepare_params(params):
    w1, b1, w2, b2 = params["w1"], params["b1"], params["w2"], params["b2"]
    c_in, h = w1.shape
    d_model = w2.shape[1]
    hp = _round_up(h, 128)
    dp = _round_up(d_model, 128)
    return {
        "w1": jnp.zeros((c_in, hp), jnp.bfloat16).at[:, :h].set(
            w1.astype(jnp.bfloat16)),
        "b1": jnp.zeros((1, hp), jnp.float32).at[0, :h].set(
            b1.astype(jnp.float32)),
        "w2": jnp.zeros((hp, dp), jnp.bfloat16).at[:h, :d_model].set(
            w2.astype(jnp.bfloat16)),
        "b2": jnp.zeros((1, dp), jnp.float32).at[0, :d_model].set(
            b2.astype(jnp.float32)),
    }


# ---------------------------------------------------------------------------
# Glue: replication pad + unfold (patchify) as a single gather, then kernel.
# ---------------------------------------------------------------------------
@functools.partial(jax.jit, static_argnames=("patch_len", "stride", "d_model"))
def patch_embedding_forward(x, params, *, patch_len, stride, d_model):
    """x: (B, V, T) float32 -> ((B, L, d_model) float32, V)."""
    B, V, T = x.shape

    # ReplicationPad1d((0, stride)): repeat last timestep `stride` times.
    last = x[:, :, -1:]                                         # (B, V, 1)
    x_pad = jnp.concatenate(
        [x, jnp.broadcast_to(last, (B, V, stride))], axis=-1)   # (B, V, T+stride)

    # unfold(dim=-1, size=patch_len, step=stride) via one gather (no stack loop)
    Tp = T + stride
    L = (Tp - patch_len) // stride + 1
    t_idx = jnp.arange(L)[:, None] * stride + jnp.arange(patch_len)[None, :]
    patches = x_pad[:, :, t_idx]                                # (B, V, L, P)

    # permute(0,2,1,3).reshape(B*L, V*patch_len); cast to bf16 for the kernel.
    x2d = jnp.transpose(patches, (0, 2, 1, 3)).reshape(
        B * L, V * patch_len).astype(jnp.bfloat16)

    # TokenEmbedding (fc1 -> ReLU -> fc2) in the Pallas kernel.
    y2d = token_embedding_pallas(
        x2d, params["w1"], params["b1"], params["w2"], params["b2"],
        d_model=d_model)
    y = y2d.reshape(B, L, d_model)

    # Dropout: identity at inference.
    return y, V


# ---------------------------------------------------------------------------
# Deterministic parameter init (shapes match nn.Linear(c_in, 2d), nn.Linear(2d, d))
# ---------------------------------------------------------------------------
def init_params(key, c_in, d_model):
    k1, k2, k3, k4 = jax.random.split(key, 4)
    h = 2 * d_model
    lim1 = 1.0 / jnp.sqrt(c_in)
    lim2 = 1.0 / jnp.sqrt(h)
    return {
        "w1": jax.random.uniform(k1, (c_in, h), jnp.float32, -lim1, lim1),
        "b1": jax.random.uniform(k2, (h,), jnp.float32, -lim1, lim1),
        "w2": jax.random.uniform(k3, (h, d_model), jnp.float32, -lim2, lim2),
        "b2": jax.random.uniform(k4, (d_model,), jnp.float32, -lim2, lim2),
    }


if __name__ == "__main__":
    # Small shapes consistent with (B, V, T) input.
    B, V, T = 2, 4, 16
    patch_len, stride, d_model = 8, 4, 32
    c_in = V * patch_len

    key = jax.random.PRNGKey(0)
    kx, kp = jax.random.split(key)
    x = jax.random.normal(kx, (B, V, T), dtype=jnp.float32)
    params = init_params(kp, c_in, d_model)
    pparams = prepare_params(params)       # pad + cast ONCE, outside jit

    out, num_vars = patch_embedding_forward(
        x, pparams, patch_len=patch_len, stride=stride, d_model=d_model
    )
    out = jax.block_until_ready(out)

    # Reference: independent patchify path (explicit loop+stack) and the same
    # bf16-operand / f32-accumulate MLP the kernel performs.
    last = x[:, :, -1:]
    x_pad = jnp.concatenate([x, jnp.repeat(last, stride, axis=-1)], axis=-1)
    L = (T + stride - patch_len) // stride + 1
    p_ref = jnp.stack(
        [x_pad[:, :, l * stride: l * stride + patch_len] for l in range(L)], axis=2
    )
    p_ref = jnp.transpose(p_ref, (0, 2, 1, 3)).reshape(B * L, c_in)

    xb = p_ref.astype(jnp.bfloat16)
    w1b = params["w1"].astype(jnp.bfloat16)
    w2b = params["w2"].astype(jnp.bfloat16)
    h_ref = jnp.maximum(
        jnp.dot(xb, w1b, preferred_element_type=jnp.float32) + params["b1"], 0.0
    )
    y_ref = (
        jnp.dot(h_ref.astype(jnp.bfloat16), w2b,
                preferred_element_type=jnp.float32) + params["b2"]
    ).reshape(B, L, d_model)

    assert out.shape == (B, L, d_model), out.shape
    assert num_vars == V
    assert jnp.allclose(out, y_ref, atol=1e-3, rtol=1e-3), float(
        jnp.max(jnp.abs(out - y_ref))
    )
    print("KERNEL_OK")
</pallas_src>

<mosaic_0001>
module attributes {stable_mosaic.version = 11 : i64} {
  func.func @_token_embed_kernel(%arg0: i32, %arg1: memref<8x32xbf16, #tpu.memory_space<vmem>>, %arg2: memref<32x128xbf16, #tpu.memory_space<vmem>>, %arg3: memref<1x128xf32, #tpu.memory_space<vmem>>, %arg4: memref<128x128xbf16, #tpu.memory_space<vmem>>, %arg5: memref<1x128xf32, #tpu.memory_space<vmem>>, %arg6: memref<8x128xf32, #tpu.memory_space<vmem>>) attributes {dimension_semantics = [#tpu.dimension_semantics<parallel>], iteration_bounds = array<i64: 1>, scalar_prefetch = 0 : i64, scratch_operands = 0 : i64, tpu.core_type = #tpu.core_type<tc>, window_params = [{transform_indices = @transform_0, window_bounds = array<i64: 8, 32>}, {pipeline_mode = #tpu.pipeline_mode<synchronous>, transform_indices = @transform_1, window_bounds = array<i64: 32, 128>}, {pipeline_mode = #tpu.pipeline_mode<synchronous>, transform_indices = @transform_2, window_bounds = array<i64: 1, 128>}, {pipeline_mode = #tpu.pipeline_mode<synchronous>, transform_indices = @transform_3, window_bounds = array<i64: 128, 128>}, {pipeline_mode = #tpu.pipeline_mode<synchronous>, transform_indices = @transform_4, window_bounds = array<i64: 1, 128>}, {transform_indices = @transform_5, window_bounds = array<i64: 8, 128>}]} {
    %c0 = arith.constant 0 : index
    %c0_0 = arith.constant 0 : index
    %0 = vector.load %arg1[%c0, %c0_0] : memref<8x32xbf16, #tpu.memory_space<vmem>>, vector<8x32xbf16>
    %c0_1 = arith.constant 0 : index
    %c0_2 = arith.constant 0 : index
    %1 = vector.load %arg2[%c0_1, %c0_2] : memref<32x128xbf16, #tpu.memory_space<vmem>>, vector<32x128xbf16>
    %cst = arith.constant dense<0.000000e+00> : vector<8x128xf32>
    %2 = tpu.matmul %0, %1, %cst {dimension_numbers = #tpu.dot_dimension_numbers<[1], [0], [0], [1], [0, 0, 1, 1], [], []>} : vector<8x32xbf16>, vector<32x128xbf16>, vector<8x128xf32> -> vector<8x128xf32>
    %c0_3 = arith.constant 0 : index
    %c0_4 = arith.constant 0 : index
    %3 = vector.load %arg3[%c0_3, %c0_4] : memref<1x128xf32, #tpu.memory_space<vmem>>, vector<1x128xf32>
    %4 = vector.broadcast %3 : vector<1x128xf32> to vector<8x128xf32>
    %5 = arith.addf %2, %4 : vector<8x128xf32>
    %cst_5 = arith.constant 0.000000e+00 : f32
    %6 = vector.broadcast %cst_5 : f32 to vector<8x128xf32>
    %7 = arith.maximumf %5, %6 : vector<8x128xf32>
    %8 = arith.truncf %7 : vector<8x128xf32> to vector<8x128xbf16>
    %c0_6 = arith.constant 0 : index
    %c0_7 = arith.constant 0 : index
    %9 = vector.load %arg4[%c0_6, %c0_7] : memref<128x128xbf16, #tpu.memory_space<vmem>>, vector<128x128xbf16>
    %cst_8 = arith.constant dense<0.000000e+00> : vector<8x128xf32>
    %10 = tpu.matmul %8, %9, %cst_8 {dimension_numbers = #tpu.dot_dimension_numbers<[1], [0], [0], [1], [0, 0, 1, 1], [], []>} : vector<8x128xbf16>, vector<128x128xbf16>, vector<8x128xf32> -> vector<8x128xf32>
    %c0_9 = arith.constant 0 : index
    %c0_10 = arith.constant 0 : index
    %11 = vector.load %arg5[%c0_9, %c0_10] : memref<1x128xf32, #tpu.memory_space<vmem>>, vector<1x128xf32>
    %12 = vector.broadcast %11 : vector<1x128xf32> to vector<8x128xf32>
    %13 = arith.addf %10, %12 : vector<8x128xf32>
    %c0_11 = arith.constant 0 : index
    %c0_12 = arith.constant 0 : index
    %14 = vector.load %arg6[%c0_11, %c0_12] : memref<8x128xf32, #tpu.memory_space<vmem>>, vector<8x128xf32>
    tpu.vector_store %arg6[%c0_11, %c0_12], %13 {strides = array<i32>} : memref<8x128xf32, #tpu.memory_space<vmem>>, vector<8x128xf32>,
    return
  }
  func.func @transform_0(%arg0: i32) -> (i32, i32) {
    %c0_i32 = arith.constant 0 : i32
    %c0_i32_0 = arith.constant 0 : i32
    return %arg0, %c0_i32 : i32, i32
  }
  func.func @transform_1(%arg0: i32) -> (i32, i32) {
    %c0_i32 = arith.constant 0 : i32
    %c0_i32_0 = arith.constant 0 : i32
    %c0_i32_1 = arith.constant 0 : i32
    return %c0_i32, %c0_i32_0 : i32, i32
  }
  func.func @transform_2(%arg0: i32) -> (i32, i32) {
    %c0_i32 = arith.constant 0 : i32
    %c0_i32_0 = arith.constant 0 : i32
    %c0_i32_1 = arith.constant 0 : i32
    return %c0_i32, %c0_i32_0 : i32, i32
  }
  func.func @transform_3(%arg0: i32) -> (i32, i32) {
    %c0_i32 = arith.constant 0 : i32
    %c0_i32_0 = arith.constant 0 : i32
    %c0_i32_1 = arith.constant 0 : i32
    return %c0_i32, %c0_i32_0 : i32, i32
  }
  func.func @transform_4(%arg0: i32) -> (i32, i32) {
    %c0_i32 = arith.constant 0 : i32
    %c0_i32_0 = arith.constant 0 : i32
    %c0_i32_1 = arith.constant 0 : i32
    return %c0_i32, %c0_i32_0 : i32, i32
  }
  func.func @transform_5(%arg0: i32) -> (i32, i32) {
    %c0_i32 = arith.constant 0 : i32
    %c0_i32_0 = arith.constant 0 : i32
    return %arg0, %c0_i32 : i32, i32
  }
}

</mosaic_0001>

<llo_original>
// kernel: patch_embedding_forward.1
$region0: #{patch_embedding_forward.1}
  #allocation0 [shape = 'u32[]', space=smem, size = 0x4, offset = 0x4, fixed_abs, tag = 'smem constant byte address 0x4 - core index']
  #allocation1 [shape = 'u32[144,128]{1,0:T(1,128)}', space=vmem, size = 0x12000, scoped, tag = 'internal scratch']
  %s0 = inlined_call_operand.vmem [shape: bf16[8,32], index: 0, kind: input, shape index: {}]
  %s1 = inlined_call_operand.vmem [shape: bf16[32,128], index: 1, kind: input, shape index: {}]
  %s2 = inlined_call_operand.vmem [shape: f32[1,128], index: 2, kind: input, shape index: {}]
  %s3 = inlined_call_operand.vmem [shape: bf16[128,128], index: 3, kind: input, shape index: {}]
  %s4 = inlined_call_operand.vmem [shape: f32[1,128], index: 4, kind: input, shape index: {}]
  %s5 = inlined_call_operand.hbm [shape: f32[8,128], index: 5, kind: output, shape index: {}]
  %s6 = sld [smem:[#allocation0]]
  $region30: #{patch_embedding_forward.1} parent=0
    _
  %s8 = ssub.s32 1, %s6
  %s9 = scalar_select 0, %s8, %s6
  $region1: #{patch_embedding_forward.1} parent=0
    #allocation2 [shape = 'u8[4096]{0}', space=vmem, size = 0x1000, scoped, tag = 'output window, operand 0, single buffered']
    #allocation3 [shape = 's32[1]{0}', space=sflag, size = 0x4, scoped, tag = 'scoped memory for patch_embedding_forward.1']
    %10 = vsyncpa [#allocation3], 0
    // Predicated region
    $region2: #{patch_embedding_forward.1} parent=1 // pred_check
      _
    $region3: #{patch_embedding_forward.1} parent=1 // pred_check_branch
      %12 = sbr.rel (0) target = $region5
    $region4: #{patch_embedding_forward.1} parent=1 // pred_region
      _
    $region5: #{patch_embedding_forward.1} parent=1 // pred_fallthru
      _
    // Predicated region
    $region6: #{patch_embedding_forward.1} parent=1 // pred_check
      _
    $region7: #{patch_embedding_forward.1} parent=1 // pred_check_branch
      %14 = sbr.rel (0) target = $region9
    $region8: #{patch_embedding_forward.1} parent=1 // pred_region
      _
    $region9: #{patch_embedding_forward.1} parent=1 // pred_fallthru
      _
    // Predicated region
    $region10: #{patch_embedding_forward.1} parent=1 // pred_check
      _
    $region11: #{patch_embedding_forward.1} parent=1 // pred_check_branch
      %16 = sbr.rel (0) target = $region13
    $region12: #{patch_embedding_forward.1} parent=1 // pred_region
      _
    $region13: #{patch_embedding_forward.1} parent=1 // pred_fallthru
      _
    // Predicated region
    $region14: #{patch_embedding_forward.1} parent=1 // pred_check
      _
    $region15: #{patch_embedding_forward.1} parent=1 // pred_check_branch
      %18 = sbr.rel (0) target = $region17
    $region16: #{patch_embedding_forward.1} parent=1 // pred_region
      _
    $region17: #{patch_embedding_forward.1} parent=1 // pred_fallthru
      _
    // Predicated region
    $region18: #{patch_embedding_forward.1} parent=1 // pred_check
      _
    $region19: #{patch_embedding_forward.1} parent=1 // pred_check_branch
      %20 = sbr.rel (0) target = $region21
    $region20: #{patch_embedding_forward.1} parent=1 // pred_region
      _
    $region21: #{patch_embedding_forward.1} parent=1 // pred_fallthru
      _
    %v22 = vld [vmem:[%s0] sm:$0xf]
    %v23 = vld [vmem:[%s1] sm:$0xf]
    %v24 = vld [vmem:[%s1 + $0x4] sm:$0xf]
    %v25 = vld [vmem:[%s1 + $0x8] sm:$0xf]
    %v26 = vld [vmem:[%s1 + $0xc] sm:$0xf]
    %v27 = vld [vmem:[%s2] sm:$0x1]
    %v29 = vlaneseq
    %v30 = vshrl.u32 %v29, 7
    %v31 = vsub.s32 0, %v30
    %v32 = vrot.slane %v27, %v31
    %v38 = vunpack.c.l.b16 %v23
    %v39 = vunpack.c.l.b16 %v24
    %v40 = vunpack.c.l.b16 %v25
    %v41 = vunpack.c.l.b16 %v26
    %v42 = vpack.c.b16 %v39, %v38
    %v43 = vpack.c.b16 %v41, %v40
    %vm46 = vcmask 261120
    %v48 = vsel %vm46, %v22, 0
    %50 = vmatprep.subr.bf16.mxu0 0
    %51 = vmatpush1.bf16.msra.mxu0 %v42
    %52 = vmatprep.subr.bf16.mxu0 0
    %53 = vmatpush1.bf16.msra.mxu0 %v43
    %54 = vmatprep.subr.bf16.mxu0 0
    %55 = vmatpush1.bf16.msra.mxu0 0
    %56 = vmatprep.subr.bf16.mxu0 0
    %57 = vmatpush1.bf16.msra.mxu0 0
    %58 = vmatprep.subr.bf16.mxu0 0
    %59 = vmatpush1.bf16.msra.mxu0 0
    %60 = vmatprep.subr.bf16.mxu0 0
    %61 = vmatpush1.bf16.msra.mxu0 0
    %62 = vmatprep.subr.bf16.mxu0 0
    %63 = vmatpush1.bf16.msra.mxu0 0
    %64 = vmatprep.subr.bf16.mxu0 0
    %65 = vmatpush1.bf16.msra.mxu0 0
    %66 = vmatprep.subr.bf16.mxu0 0
    %67 = vmatpush1.bf16.msra.mxu0 0
    %68 = vmatprep.subr.bf16.mxu0 0
    %69 = vmatpush1.bf16.msra.mxu0 0
    %70 = vmatprep.subr.bf16.mxu0 0
    %71 = vmatpush1.bf16.msra.mxu0 0
    %72 = vmatprep.subr.bf16.mxu0 0
    %73 = vmatpush1.bf16.msra.mxu0 0
    %74 = vmatprep.subr.bf16.mxu0 0
    %75 = vmatpush1.bf16.msra.mxu0 0
    %76 = vmatprep.subr.bf16.mxu0 0
    %77 = vmatpush1.bf16.msra.mxu0 0
    %78 = vmatprep.subr.bf16.mxu0 0
    %79 = vmatpush1.bf16.msra.mxu0 0
    %80 = vmatprep.subr.bf16.mxu0 0
    %81 = vmatpush1.bf16.msra.mxu0 0
    %82 = vmatprep.mubr.bf16.mxu0 0
    %83 = vmatmul.mubr.bf16.gmra.mrb[0].mxu0 %v48
    %v84 = vpop.f32.mrb[0].mxu0
    %v85 = vadd.f32 %v32, %v84
    %v86 = vpop.f32.mrb[0].mxu0
    %v87 = vpop.f32.mrb[0].mxu0
    %v88 = vpop.f32.mrb[0].mxu0
    %89 = vdwg.mxu0
    %v90 = vmax.f32 %v85, 0.0
    %v91 = vpack.c.bf16 %v90, %v90
    %v92 = vld [vmem:[%s3] sm:$0xf]
    %v93 = vld [vmem:[%s3 + $0x4] sm:$0xf]
    %v94 = vld [vmem:[%s3 + $0x8] sm:$0xf]
    %v95 = vld [vmem:[%s3 + $0xc] sm:$0xf]
    %v96 = vld [vmem:[%s3 + $0x10] sm:$0xf]
    %v97 = vld [vmem:[%s3 + $0x14] sm:$0xf]
    %v98 = vld [vmem:[%s3 + $0x18] sm:$0xf]
    %v99 = vld [vmem:[%s3 + $0x1c] sm:$0xf]
    %v100 = vld [vmem:[%s3 + $0x20] sm:$0xf]
    %v101 = vld [vmem:[%s3 + $0x24] sm:$0xf]
    %v102 = vld [vmem:[%s3 + $0x28] sm:$0xf]
    %v103 = vld [vmem:[%s3 + $0x2c] sm:$0xf]
    %v104 = vld [vmem:[%s3 + $0x30] sm:$0xf]
    %v105 = vld [vmem:[%s3 + $0x34] sm:$0xf]
    %v106 = vld [vmem:[%s3 + $0x38] sm:$0xf]
    %v107 = vld [vmem:[%s3 + $0x3c] sm:$0xf]
    %v108 = vld [vmem:[%s4] sm:$0x1]
    %v110 = vlaneseq
    %v111 = vshrl.u32 %v110, 7
    %v112 = vsub.s32 0, %v111
    %v113 = vrot.slane %v108, %v112
    %v131 = vunpack.c.l.b16 %v92
    %v132 = vunpack.c.l.b16 %v93
    %v133 = vunpack.c.l.b16 %v94
    %v134 = vunpack.c.l.b16 %v95
    %v135 = vunpack.c.l.b16 %v96
    %v136 = vunpack.c.l.b16 %v97
    %v137 = vunpack.c.l.b16 %v98
    %v138 = vunpack.c.l.b16 %v99
    %v139 = vunpack.c.l.b16 %v100
    %v140 = vunpack.c.l.b16 %v101
    %v141 = vunpack.c.l.b16 %v102
    %v142 = vunpack.c.l.b16 %v103
    %v143 = vunpack.c.l.b16 %v104
    %v144 = vunpack.c.l.b16 %v105
    %v145 = vunpack.c.l.b16 %v106
    %v146 = vunpack.c.l.b16 %v107
    %v147 = vpack.c.b16 %v132, %v131
    %v148 = vpack.c.b16 %v134, %v133
    %v149 = vpack.c.b16 %v136, %v135
    %v150 = vpack.c.b16 %v138, %v137
    %v151 = vpack.c.b16 %v140, %v139
    %v152 = vpack.c.b16 %v142, %v141
    %v153 = vpack.c.b16 %v144, %v143
    %v154 = vpack.c.b16 %v146, %v145
    %163 = vmatprep.subr.bf16.mxu0 0
    %164 = vmatpush1.bf16.msra.mxu0 %v147
    %165 = vmatprep.subr.bf16.mxu0 0
    %166 = vmatpush1.bf16.msra.mxu0 %v148
    %167 = vmatprep.subr.bf16.mxu0 0
    %168 = vmatpush1.bf16.msra.mxu0 %v149
    %169 = vmatprep.subr.bf16.mxu0 0
    %170 = vmatpush1.bf16.msra.mxu0 %v150
    %171 = vmatprep.subr.bf16.mxu0 0
    %172 = vmatpush1.bf16.msra.mxu0 %v151
    %173 = vmatprep.subr.bf16.mxu0 0
    %174 = vmatpush1.bf16.msra.mxu0 %v152
    %175 = vmatprep.subr.bf16.mxu0 0
    %176 = vmatpush1.bf16.msra.mxu0 %v153
    %177 = vmatprep.subr.bf16.mxu0 0
    %178 = vmatpush1.bf16.msra.mxu0 %v154
    %179 = vmatprep.subr.bf16.mxu0 0
    %180 = vmatpush1.bf16.msra.mxu0 0
    %181 = vmatprep.subr.bf16.mxu0 0
    %182 = vmatpush1.bf16.msra.mxu0 0
    %183 = vmatprep.subr.bf16.mxu0 0
    %184 = vmatpush1.bf16.msra.mxu0 0
    %185 = vmatprep.subr.bf16.mxu0 0
    %186 = vmatpush1.bf16.msra.mxu0 0
    %187 = vmatprep.subr.bf16.mxu0 0
    %188 = vmatpush1.bf16.msra.mxu0 0
    %189 = vmatprep.subr.bf16.mxu0 0
    %190 = vmatpush1.bf16.msra.mxu0 0
    %191 = vmatprep.subr.bf16.mxu0 0
    %192 = vmatpush1.bf16.msra.mxu0 0
    %193 = vmatprep.subr.bf16.mxu0 0
    %194 = vmatpush1.bf16.msra.mxu0 0
    %195 = vmatprep.mubr.bf16.mxu0 0
    %196 = vmatmul.mubr.bf16.gmra.mrb[0].mxu0 %v91
    %v197 = vpop.f32.mrb[0].mxu0
    %v198 = vadd.f32 %v113, %v197
    %v199 = vpop.f32.mrb[0].mxu0
    %v200 = vpop.f32.mrb[0].mxu0
    %v201 = vpop.f32.mrb[0].mxu0
    %202 = vdwg.mxu0
    %203 = vst [vmem:[#allocation2] sm:$0xff] %v198
    // Predicated region
    $region22: #{patch_embedding_forward.1} parent=1 // pred_check
      _
    $region23: #{patch_embedding_forward.1} parent=1 // pred_check_branch
      %205 = sbr.rel (0) target = $region25
    $region24: #{patch_embedding_forward.1} parent=1 // pred_region
      %s207 = ssub.s32 128, 128
      %208 = vsyncadd [#allocation3], %s207
      %s210 = sshll.u32 [#allocation2], 4
      %s211 = int_to_ptr.vmem [resolvable:$true] %s210
      %213 = dma.vmem_to_hbm [thread:$0]  %s211, 128, %s5, [#allocation3]
    $region25: #{patch_embedding_forward.1} parent=1 // pred_fallthru
      _
    // Predicated region
    $region26: #{patch_embedding_forward.1} parent=1 // pred_check
      _
    $region27: #{patch_embedding_forward.1} parent=1 // pred_check_branch
      %215 = sbr.rel (0) target = $region29
    $region28: #{patch_embedding_forward.1} parent=1 // pred_region
      %216 = dma.done [#allocation3], 128
    $region29: #{patch_embedding_forward.1} parent=1 // pred_fallthru
      _
    %217 = vsyncpa [#allocation3], 1

</llo_original>
